<compile_context>
chip_gen: v7x
topology: tpu7x:2x2x1
jax: 0.10.0
libtpu: 0.0.40
codegen_flags: <defaults>
</compile_context>

<pallas_src>
import jax
import jax.numpy as jnp
from jax import lax
from jax.experimental import pallas as pl
from jax.experimental.pallas import tpu as pltpu


def _vmem_capacity_bytes():
    """Physical VMEM of the attached TPU generation (fallback: v7x's 64 MiB)."""
    try:
        info = pltpu.get_tpu_info()
        cap = getattr(info, "vmem_capacity_bytes", None)
        if cap:
            return int(cap)
    except Exception:
        pass
    return 64 << 20


def gumbel_attention_kernel(feats_ref, h_ref, gn_ref, wv_ref, wa_ref, att_ref, alpha_ref):
    """Processes Bt batch rows per grid step.

    feats_ref : (Bt, N, F)  matmul dtype (bf16 by default)
    h_ref     : (Bt, 1, A)  f32   precomputed wh(key) + bh + bv
    gn_ref    : (Bt, N, 1)  f32   Gumbel noise
    wv_ref    : (F, A)      matmul dtype (resident)
    wa_ref    : (1, A)      f32   (resident)
    att_ref   : (Bt, 1, F)  out dtype
    alpha_ref : (Bt, 1, N)  out dtype
    """
    bt, n, f = feats_ref.shape
    a = wv_ref.shape[1]

    feats = feats_ref[...]                                          # (Bt, N, F), native mm dtype

    # v = wv(feats): the one fat MXU contraction, f32 accumulation.
    v = jnp.dot(feats.reshape(bt * n, f), wv_ref[...],
                preferred_element_type=jnp.float32)                 # (Bt*N, A) f32

    # inputs = wh(key)+bh+bv (precomputed, broadcast over N) + wv(feats); tanh on the EUP in f32.
    t = jnp.tanh(v.reshape(bt, n, a) + h_ref[...])                  # (Bt, N, A) f32

    # scores = wa(tanh(inputs)).squeeze(-1): A is tiny -> VPU mul + lane reduce (free slots).
    wa = wa_ref[...].reshape(1, 1, a).astype(jnp.float32)
    scores = jnp.sum(t * wa, axis=-1, keepdims=True)                # (Bt, N, 1) f32

    # st_gumbel_softmax forward value == one-hot(argmax(scores + gumbel_noise)), first-index ties.
    y = scores + gn_ref[...]                                        # (Bt, N, 1) f32
    m = jnp.max(y, axis=1, keepdims=True)                           # (Bt, 1, 1)
    row = lax.broadcasted_iota(jnp.int32, (bt, n, 1), 1)            # (Bt, N, 1)
    cand = jnp.where(y >= m, row, n)                                # sentinel n for non-max rows
    idx = jnp.min(cand, axis=1, keepdims=True)                      # (Bt, 1, 1) first argmax

    # alpha: lane-dense one-hot written with a single unmasked store per step.
    lane = lax.broadcasted_iota(jnp.int32, (bt, 1, n), 2)           # (Bt, 1, N)
    alpha_ref[...] = (lane == idx).astype(alpha_ref.dtype)

    # att_feats = bmm(alpha, feats): one-hot row select as masked VPU select + sublane reduce
    # over the already-resident feats block (no extra MXU work).
    sel = jnp.where(row == idx, feats.astype(jnp.float32), 0.0)     # (Bt, N, F) f32
    att_ref[...] = jnp.sum(sel, axis=1, keepdims=True).astype(att_ref.dtype)   # (Bt, 1, F)


def _matmul_dtype(feats_dtype, requested):
    if requested is None:
        return jnp.dtype(feats_dtype)
    mm = jnp.dtype(requested)
    # Never upcast feats just for the matmul (e.g. feats already bf16/fp8-ish).
    if jnp.dtype(feats_dtype).itemsize < mm.itemsize:
        return jnp.dtype(feats_dtype)
    return mm


def _key_projection(key, wh_t, bh, bv):
    """Hoisted (B,H)@(H,A) projection + both biases, in plain XLA (f32)."""
    return (jnp.dot(key.astype(jnp.float32), wh_t.astype(jnp.float32))
            + bh.astype(jnp.float32) + bv.astype(jnp.float32))


def gumbel_attention(feats, key, gnoise, wh_t, bh, wv_t, bv, wa_row,
                     *, block_b=None, matmul_dtype=jnp.bfloat16):
    B, N, F = feats.shape
    A = wv_t.shape[1]

    mm_dtype = _matmul_dtype(feats.dtype, matmul_dtype)
    mm_is = jnp.dtype(mm_dtype).itemsize
    out_dtype = feats.dtype
    out_is = jnp.dtype(out_dtype).itemsize

    # Operands for the kernel (no HBM-side lane padding; Mosaic pads in VMEM).
    feats_mm = feats.astype(mm_dtype)                               # (B, N, F)
    wv_mm = wv_t.astype(mm_dtype)                                   # (F, A)
    wa_f32 = wa_row.reshape(1, -1).astype(jnp.float32)              # (1, A)
    h = _key_projection(key, wh_t, bh, bv).reshape(B, 1, A)         # (B, 1, A) f32 (hoisted)
    gn = gnoise.astype(jnp.float32).reshape(B, N, 1)                # (B, N, 1) f32

    # --- VMEM budget & batch-tile (Bt) selection (generation-aware) ------------------------
    vmem_cap = _vmem_capacity_bytes()                 # 128 MiB on v5e/v6e, 64 MiB on v7x
    vmem_budget = min(vmem_cap // 2, 64 << 20)        # stay well inside the physical capacity

    # Pallas double-buffers every stream (incl. the constant-index weights): count x2.
    stream_row = N * F * mm_is + A * 4 + N * 4 + F * out_is + N * out_is
    temp_row = 2 * N * A * 4 + N * F * 4 + 4 * N * 4 + F * 4       # rough f32 temporaries
    per_row = 2 * stream_row + temp_row
    weights_fixed = 2 * (F * A * mm_is + A * 4)

    if block_b is None:
        max_rows_vmem = max(1, int(0.5 * vmem_budget - weights_fixed) // per_row)
        max_rows_dma = max(1, (1 << 20) // max(N * F * mm_is, 1))   # ~1 MiB feats DMA target
        cap = max(1, min(B, max_rows_vmem, max_rows_dma))
        block_b = 1
        for cand in range(cap, 0, -1):
            if B % cand:
                continue
            if B >= 2 and B // cand < 2:        # keep >= 2 grid steps for v7x's two TensorCores
                continue
            block_b = cand
            break
    Bt = block_b
    assert B % Bt == 0
    grid = (B // Bt,)

    vmem_limit = int(min(vmem_budget, max(16 << 20, weights_fixed + Bt * per_row + (4 << 20))))

    # Cost estimate from true (unpadded) shapes.
    flops = 2 * B * N * F * A + 2 * B * N * A + 2 * B * N * F
    transcendentals = B * N * A
    bytes_accessed = int(B * N * F * mm_is + B * A * 4 + B * N * 4
                         + F * A * mm_is + A * 4 + B * (F + N) * out_is)

    batch_map = lambda b: (b, 0, 0)
    const_map = lambda b: (0, 0)                 # same block every step -> resident in VMEM

    att3, alpha3 = pl.pallas_call(
        gumbel_attention_kernel,
        out_shape=(jax.ShapeDtypeStruct((B, 1, F), out_dtype),
                   jax.ShapeDtypeStruct((B, 1, N), out_dtype)),
        grid=grid,
        in_specs=[
            pl.BlockSpec((Bt, N, F), batch_map),   # feats (mm dtype)
            pl.BlockSpec((Bt, 1, A), batch_map),   # hoisted key projection (f32)
            pl.BlockSpec((Bt, N, 1), batch_map),   # gumbel noise (f32)
            pl.BlockSpec((F, A), const_map),       # wv^T (mm dtype, resident)
            pl.BlockSpec((1, A), const_map),       # wa row (f32, resident)
        ],
        out_specs=(pl.BlockSpec((Bt, 1, F), batch_map),
                   pl.BlockSpec((Bt, 1, N), batch_map)),
        compiler_params=pltpu.CompilerParams(
            dimension_semantics=("parallel",),     # batch tiles independent -> megacore on v7x
            vmem_limit_bytes=vmem_limit),
        cost_estimate=pl.CostEstimate(flops=flops,
                                      transcendentals=transcendentals,
                                      bytes_accessed=bytes_accessed),
    )(feats_mm, h, gn, wv_mm, wa_f32)

    return att3[:, 0, :], alpha3[:, 0, :]


def gumbel_attention_ref(feats, key, gnoise, wh_t, bh, wv_t, bv, wa_row,
                         matmul_dtype=jnp.bfloat16):
    """Pure-JAX reference matching the PyTorch forward under the same matmul precision policy."""
    B, N, F = feats.shape
    A = wv_t.shape[1]
    mm_dtype = _matmul_dtype(feats.dtype, matmul_dtype)

    feats_mm = feats.astype(mm_dtype)
    wv_mm = wv_t.astype(mm_dtype)
    wa_f32 = wa_row.reshape(1, -1).astype(jnp.float32)

    v = jnp.dot(feats_mm.reshape(B * N, F), wv_mm,
                preferred_element_type=jnp.float32).reshape(B, N, A)
    h = _key_projection(key, wh_t, bh, bv)                          # (B, A)
    t = jnp.tanh(v + h[:, None, :])
    scores = jnp.sum(t * wa_f32.reshape(1, 1, A), axis=-1)          # (B, N)
    y = scores + gnoise.astype(jnp.float32)
    idx = jnp.argmax(y, axis=-1)                                    # first max index (ties)
    alpha = jax.nn.one_hot(idx, N, dtype=feats.dtype)
    att = jnp.einsum('bn,bnf->bf', alpha.astype(jnp.float32),
                     feats_mm.astype(jnp.float32)).astype(feats.dtype)
    return att, alpha


def init_params(rng, feat_size, hidden_size, att_size):
    """Deterministic init mimicking nn.Linear defaults: U(-1/sqrt(fan_in), 1/sqrt(fan_in))."""
    k = jax.random.split(rng, 5)
    bh_bound = 1.0 / jnp.sqrt(hidden_size)
    bv_bound = 1.0 / jnp.sqrt(feat_size)
    ba_bound = 1.0 / jnp.sqrt(att_size)
    wh_t = jax.random.uniform(k[0], (hidden_size, att_size), jnp.float32, -bh_bound, bh_bound)
    bh = jax.random.uniform(k[1], (1, att_size), jnp.float32, -bh_bound, bh_bound)
    wv_t = jax.random.uniform(k[2], (feat_size, att_size), jnp.float32, -bv_bound, bv_bound)
    bv = jax.random.uniform(k[3], (1, att_size), jnp.float32, -bv_bound, bv_bound)
    wa_row = jax.random.uniform(k[4], (1, att_size), jnp.float32, -ba_bound, ba_bound)  # Linear(A,1,bias=False)
    return wh_t, bh, wv_t, bv, wa_row


if __name__ == "__main__":
    B, N, F, H, A = 2, 8, 16, 32, 16   # batch, feat_num, feat_size, hidden_size, att_size

    root = jax.random.PRNGKey(0)
    k_feats, k_key, k_noise, k_params = jax.random.split(root, 4)

    feats = jax.random.normal(k_feats, (B, N, F), jnp.float32)
    key_in = jax.random.normal(k_key, (B, H), jnp.float32)

    # Gumbel noise exactly as the reference st_gumbel_softmax: -log(-log(u + eps) + eps)
    eps = 1e-20
    u = jax.random.uniform(k_noise, (B, N), jnp.float32)
    gnoise = -jnp.log(-jnp.log(u + eps) + eps)

    params = init_params(k_params, F, H, A)

    att_feats, alpha = gumbel_attention(feats, key_in, gnoise, *params)
    jax.block_until_ready((att_feats, alpha))

    assert att_feats.shape == (B, F)
    assert alpha.shape == (B, N)
    # alpha must be one-hot per row
    assert bool(jnp.all(jnp.sum(alpha, axis=-1) == 1.0))

    att_ref, alpha_ref = gumbel_attention_ref(feats, key_in, gnoise, *params)
    assert bool(jnp.array_equal(alpha, alpha_ref)), "alpha mismatch vs JAX reference"
    assert bool(jnp.allclose(att_feats, att_ref, rtol=1e-5, atol=1e-5)), "att_feats mismatch vs JAX reference"

    print("KERNEL_OK")
</pallas_src>

<mosaic_0001>
module attributes {stable_mosaic.version = 11 : i64} {
  func.func @gumbel_attention_kernel(%arg0: i32, %arg1: memref<1x8x16xbf16, #tpu.memory_space<vmem>>, %arg2: memref<1x1x16xf32, #tpu.memory_space<vmem>>, %arg3: memref<1x8x1xf32, #tpu.memory_space<vmem>>, %arg4: memref<16x16xbf16, #tpu.memory_space<vmem>>, %arg5: memref<1x16xf32, #tpu.memory_space<vmem>>, %arg6: memref<1x1x16xf32, #tpu.memory_space<vmem>>, %arg7: memref<1x1x8xf32, #tpu.memory_space<vmem>>) attributes {dimension_semantics = [#tpu.dimension_semantics<parallel>], iteration_bounds = array<i64: 2>, scalar_prefetch = 0 : i64, scratch_operands = 0 : i64, tpu.core_type = #tpu.core_type<tc>, window_params = [{transform_indices = @transform_0, window_bounds = array<i64: 1, 8, 16>}, {transform_indices = @transform_1, window_bounds = array<i64: 1, 1, 16>}, {transform_indices = @transform_2, window_bounds = array<i64: 1, 8, 1>}, {pipeline_mode = #tpu.pipeline_mode<synchronous>, transform_indices = @transform_3, window_bounds = array<i64: 16, 16>}, {pipeline_mode = #tpu.pipeline_mode<synchronous>, transform_indices = @transform_4, window_bounds = array<i64: 1, 16>}, {transform_indices = @transform_5, window_bounds = array<i64: 1, 1, 16>}, {transform_indices = @transform_6, window_bounds = array<i64: 1, 1, 8>}]} {
    %c0 = arith.constant 0 : index
    %c0_0 = arith.constant 0 : index
    %c0_1 = arith.constant 0 : index
    %0 = vector.load %arg1[%c0, %c0_0, %c0_1] : memref<1x8x16xbf16, #tpu.memory_space<vmem>>, vector<1x8x16xbf16>
    %1 = vector.shape_cast %0 : vector<1x8x16xbf16> to vector<8x16xbf16>
    %c0_2 = arith.constant 0 : index
    %c0_3 = arith.constant 0 : index
    %2 = vector.load %arg4[%c0_2, %c0_3] : memref<16x16xbf16, #tpu.memory_space<vmem>>, vector<16x16xbf16>
    %cst = arith.constant dense<0.000000e+00> : vector<8x16xf32>
    %3 = tpu.matmul %1, %2, %cst {dimension_numbers = #tpu.dot_dimension_numbers<[1], [0], [0], [1], [0, 0, 1, 1], [], []>} : vector<8x16xbf16>, vector<16x16xbf16>, vector<8x16xf32> -> vector<8x16xf32>
    %4 = vector.shape_cast %3 : vector<8x16xf32> to vector<1x8x16xf32>
    %c0_4 = arith.constant 0 : index
    %c0_5 = arith.constant 0 : index
    %c0_6 = arith.constant 0 : index
    %5 = vector.load %arg2[%c0_4, %c0_5, %c0_6] : memref<1x1x16xf32, #tpu.memory_space<vmem>>, vector<1x1x16xf32>
    %6 = vector.broadcast %5 : vector<1x1x16xf32> to vector<1x8x16xf32>
    %7 = arith.addf %4, %6 : vector<1x8x16xf32>
    %8 = math.tanh %7 : vector<1x8x16xf32>
    %c0_7 = arith.constant 0 : index
    %c0_8 = arith.constant 0 : index
    %9 = vector.load %arg5[%c0_7, %c0_8] : memref<1x16xf32, #tpu.memory_space<vmem>>, vector<1x16xf32>
    %10 = vector.shape_cast %9 : vector<1x16xf32> to vector<1x1x16xf32>
    %11 = vector.broadcast %10 : vector<1x1x16xf32> to vector<1x8x16xf32>
    %12 = arith.mulf %8, %11 : vector<1x8x16xf32>
    %cst_9 = arith.constant dense<0.000000e+00> : vector<1x8xf32>
    %13 = vector.multi_reduction <add>, %12, %cst_9 [2] : vector<1x8x16xf32> to vector<1x8xf32>
    %14 = vector.shape_cast %13 : vector<1x8xf32> to vector<1x8x1xf32>
    %c0_10 = arith.constant 0 : index
    %c0_11 = arith.constant 0 : index
    %c0_12 = arith.constant 0 : index
    %15 = vector.load %arg3[%c0_10, %c0_11, %c0_12] : memref<1x8x1xf32, #tpu.memory_space<vmem>>, vector<1x8x1xf32>
    %16 = arith.addf %14, %15 : vector<1x8x1xf32>
    %cst_13 = arith.constant dense<0xFF800000> : vector<1x1xf32>
    %17 = vector.multi_reduction <maximumf>, %16, %cst_13 [1] : vector<1x8x1xf32> to vector<1x1xf32>
    %18 = vector.shape_cast %17 : vector<1x1xf32> to vector<1x1x1xf32>
    %19 = tpu.iota {dimensions = array<i32: 1>} : vector<1x8x1xi32>
    %20 = vector.broadcast %18 : vector<1x1x1xf32> to vector<1x8x1xf32>
    %21 = arith.cmpf oge, %16, %20 : vector<1x8x1xf32>
    %c8_i32 = arith.constant 8 : i32
    %22 = vector.broadcast %c8_i32 : i32 to vector<1x8x1xi32>
    %23 = arith.select %21, %19, %22 : vector<1x8x1xi1>, vector<1x8x1xi32>
    %cst_14 = arith.constant dense<2147483647> : vector<1x1xi32>
    %24 = vector.multi_reduction <minsi>, %23, %cst_14 [1] : vector<1x8x1xi32> to vector<1x1xi32>
    %25 = vector.shape_cast %24 : vector<1x1xi32> to vector<1x1x1xi32>
    %26 = tpu.iota {dimensions = array<i32: 2>} : vector<1x1x8xi32>
    %27 = vector.broadcast %25 : vector<1x1x1xi32> to vector<1x1x8xi32>
    %28 = arith.cmpi eq, %26, %27 : vector<1x1x8xi32>
    %29 = arith.extui %28 : vector<1x1x8xi1> to vector<1x1x8xi32>
    %30 = arith.sitofp %29 : vector<1x1x8xi32> to vector<1x1x8xf32>
    %c0_15 = arith.constant 0 : index
    %c0_16 = arith.constant 0 : index
    %c0_17 = arith.constant 0 : index
    %31 = vector.load %arg7[%c0_15, %c0_16, %c0_17] : memref<1x1x8xf32, #tpu.memory_space<vmem>>, vector<1x1x8xf32>
    tpu.vector_store %arg7[%c0_15, %c0_16, %c0_17], %30 {strides = array<i32>} : memref<1x1x8xf32, #tpu.memory_space<vmem>>, vector<1x1x8xf32>,
    %32 = vector.broadcast %25 : vector<1x1x1xi32> to vector<1x8x1xi32>
    %33 = arith.cmpi eq, %19, %32 : vector<1x8x1xi32>
    %34 = arith.extf %0 : vector<1x8x16xbf16> to vector<1x8x16xf32>
    %cst_18 = arith.constant 0.000000e+00 : f32
    %35 = vector.shape_cast %33 : vector<1x8x1xi1> to vector<1x8x1xi1>
    %36 = vector.broadcast %35 : vector<1x8x1xi1> to vector<1x8x16xi1>
    %37 = vector.broadcast %cst_18 : f32 to vector<1x8x16xf32>
    %38 = arith.select %36, %34, %37 : vector<1x8x16xi1>, vector<1x8x16xf32>
    %cst_19 = arith.constant dense<0.000000e+00> : vector<1x16xf32>
    %39 = vector.multi_reduction <add>, %38, %cst_19 [1] : vector<1x8x16xf32> to vector<1x16xf32>
    %40 = vector.shape_cast %39 : vector<1x16xf32> to vector<1x1x16xf32>
    %c0_20 = arith.constant 0 : index
    %c0_21 = arith.constant 0 : index
    %c0_22 = arith.constant 0 : index
    %41 = vector.load %arg6[%c0_20, %c0_21, %c0_22] : memref<1x1x16xf32, #tpu.memory_space<vmem>>, vector<1x1x16xf32>
    tpu.vector_store %arg6[%c0_20, %c0_21, %c0_22], %40 {strides = array<i32>} : memref<1x1x16xf32, #tpu.memory_space<vmem>>, vector<1x1x16xf32>,
    return
  }
  func.func @transform_0(%arg0: i32) -> (i32, i32, i32) {
    %c0_i32 = arith.constant 0 : i32
    %c0_i32_0 = arith.constant 0 : i32
    %c0_i32_1 = arith.constant 0 : i32
    return %arg0, %c0_i32, %c0_i32_0 : i32, i32, i32
  }
  func.func @transform_1(%arg0: i32) -> (i32, i32, i32) {
    %c0_i32 = arith.constant 0 : i32
    %c0_i32_0 = arith.constant 0 : i32
    %c0_i32_1 = arith.constant 0 : i32
    return %arg0, %c0_i32, %c0_i32_0 : i32, i32, i32
  }
  func.func @transform_2(%arg0: i32) -> (i32, i32, i32) {
    %c0_i32 = arith.constant 0 : i32
    %c0_i32_0 = arith.constant 0 : i32
    %c0_i32_1 = arith.constant 0 : i32
    return %arg0, %c0_i32, %c0_i32_0 : i32, i32, i32
  }
  func.func @transform_3(%arg0: i32) -> (i32, i32) {
    %c0_i32 = arith.constant 0 : i32
    %c0_i32_0 = arith.constant 0 : i32
    %c0_i32_1 = arith.constant 0 : i32
    return %c0_i32, %c0_i32_0 : i32, i32
  }
  func.func @transform_4(%arg0: i32) -> (i32, i32) {
    %c0_i32 = arith.constant 0 : i32
    %c0_i32_0 = arith.constant 0 : i32
    %c0_i32_1 = arith.constant 0 : i32
    return %c0_i32, %c0_i32_0 : i32, i32
  }
  func.func @transform_5(%arg0: i32) -> (i32, i32, i32) {
    %c0_i32 = arith.constant 0 : i32
    %c0_i32_0 = arith.constant 0 : i32
    %c0_i32_1 = arith.constant 0 : i32
    return %arg0, %c0_i32, %c0_i32_0 : i32, i32, i32
  }
  func.func @transform_6(%arg0: i32) -> (i32, i32, i32) {
    %c0_i32 = arith.constant 0 : i32
    %c0_i32_0 = arith.constant 0 : i32
    %c0_i32_1 = arith.constant 0 : i32
    return %arg0, %c0_i32, %c0_i32_0 : i32, i32, i32
  }
}

</mosaic_0001>

<llo_original>
// kernel: tpu_custom_call.1
$region0: #{tpu_custom_call.1}
  #allocation0 [shape = 'u32[]', space=smem, size = 0x4, offset = 0x4, fixed_abs, tag = 'smem constant byte address 0x4 - core index']
  #allocation1 [shape = 'u32[144,128]{1,0:T(1,128)}', space=vmem, size = 0x12000, scoped, tag = 'internal scratch']
  %s0 = inlined_call_operand.vmem [shape: bf16[2,8,16], index: 0, kind: input, shape index: {}]
  %s1 = inlined_call_operand.vmem [shape: f32[2,1,16], index: 1, kind: input, shape index: {}]
  %s2 = inlined_call_operand.vmem [shape: f32[2,8,1], index: 2, kind: input, shape index: {}]
  %s3 = inlined_call_operand.vmem [shape: bf16[16,16], index: 3, kind: input, shape index: {}]
  %s4 = inlined_call_operand.vmem [shape: f32[1,16], index: 4, kind: input, shape index: {}]
  %s5 = inlined_call_operand.hbm [shape: f32[2,1,16], index: 5, kind: output, shape index: {0}]
  %s6 = inlined_call_operand.hbm [shape: f32[2,1,8], index: 6, kind: output, shape index: {1}]
  %7 = xla_tuple %s5, %s6
  %s8 = sld [smem:[#allocation0]]
  $region61: #{tpu_custom_call.1} parent=0
    _
  %s10 = ssub.s32 1, %s8
  %s11 = scalar_select 0, %s10, %s8
  $region1: #{tpu_custom_call.1} parent=0
    #allocation2 [shape = 'u8[1024]{0}', space=vmem, size = 0x400, scoped, tag = 'output window, operand 0']
    #allocation3 [shape = 's32[2]{0}', space=sflag, size = 0x8, scoped, tag = 'scoped memory for tpu_custom_call.1']
    #allocation4 [shape = 'u8[1024]{0}', space=vmem, size = 0x400, scoped, tag = 'output window, operand 1']
    #allocation5 [shape = 's32[2]{0}', space=sflag, size = 0x8, scoped, tag = 'scoped memory for tpu_custom_call.1']
    %12 = vsyncpa [#allocation3], 0
    %s13 = scalar_lea.sflag [#allocation3], 1
    %14 = vsyncpa %s13, 0
    %15 = vsyncpa [#allocation5], 0
    %s16 = scalar_lea.sflag [#allocation5], 1
    %17 = vsyncpa %s16, 0
    loop: start=0, step=1, limit=4
    $region2: #{tpu_custom_call.1} parent=1 // loop_pre_header
      _
    $region3: #{tpu_custom_call.1} parent=1 // loop_header
      %s19 = sphi 0, %s23
      %p20 = scmp.ge.s32.totalorder %s19, 4
      %s29 = sphi 0, %s31
      %s32 = sphi 0, %s29
      %s33 = sphi 0, %s32
      %s49 = sphi 0, %s33
      %s55 = sphi 0, %s57
      %s58 = sphi 0, %s55
      %s59 = sphi 0, %s58
      %s75 = sphi 0, %s59
      %s81 = sphi 0, %s83
      %s84 = sphi 0, %s81
      %s85 = sphi 0, %s84
      %s101 = sphi 0, %s85
      %s105 = sphi 0, %s105
      %s107 = sphi 0, %s105
      %s108 = sphi 0, %s107
      %s122 = sphi 0, %s108
      %s126 = sphi 0, %s126
      %s128 = sphi 0, %s126
      %s129 = sphi 0, %s128
      %s143 = sphi 0, %s129
      %s149 = sphi 0, %s151
      %s152 = sphi 0, %s149
      %s153 = sphi 0, %s152
      %s169 = sphi 0, %s153
      %s175 = sphi 0, %s177
      %s178 = sphi 0, %s175
      %s179 = sphi 0, %s178
      %s195 = sphi 0, %s179
    $region4: #{tpu_custom_call.1} parent=1 // loop_header_branch
      %22 = sbr.rel (%p20) target = $region8
    $region5: #{tpu_custom_call.1} parent=1 // loop_body
      %s24 = ssub.s32 %s19, 1
      %s25 = ssub.s32 %s19, 2
      %s26 = sadd.s32 %s19, 1
      %s27 = ssub.s32 %s19, %s26
      %p28 = scmp.eq.s32.totalorder %s27, 0
      %s30 = sadd.s32 %s29, 1
      %s31 = scalar_select %p28, %s29, %s30
      %p34 = pneg %p28
      %p35 = scmp.eq.s32.totalorder %s19, 1
      %p36 = por %p34, %p35
      %p37 = scmp.ne.s32.totalorder %s29, %s32
      %p38 = scmp.eq.s32.totalorder %s19, 0
      %p39 = por %p37, %p38
      %p40 = scmp.ne.s32.totalorder %s29, %s32
      %p41 = scmp.eq.s32.totalorder %s24, 1
      %p42 = por %p40, %p41
      %p43 = scmp.ne.s32.totalorder %s32, %s33
      %p44 = scmp.eq.s32.totalorder %s24, 0
      %p45 = por %p43, %p44
      %p46 = scmp.ne.s32.totalorder %s32, %s33
      %p47 = scmp.eq.s32.totalorder %s25, 1
      %p48 = por %p46, %p47
      %p50 = scmp.ne.s32.totalorder %s33, %s49
      %p51 = scmp.eq.s32.totalorder %s25, 0
      %p52 = por %p50, %p51
      %s53 = ssub.s32 %s19, %s26
      %p54 = scmp.eq.s32.totalorder %s53, 0
      %s56 = sadd.s32 %s55, 1
      %s57 = scalar_select %p54, %s55, %s56
      %p60 = pneg %p54
      %p61 = scmp.eq.s32.totalorder %s19, 1
      %p62 = por %p60, %p61
      %p63 = scmp.ne.s32.totalorder %s55, %s58
      %p64 = scmp.eq.s32.totalorder %s19, 0
      %p65 = por %p63, %p64
      %p66 = scmp.ne.s32.totalorder %s55, %s58
      %p67 = scmp.eq.s32.totalorder %s24, 1
      %p68 = por %p66, %p67
      %p69 = scmp.ne.s32.totalorder %s58, %s59
      %p70 = scmp.eq.s32.totalorder %s24, 0
      %p71 = por %p69, %p70
      %p72 = scmp.ne.s32.totalorder %s58, %s59
      %p73 = scmp.eq.s32.totalorder %s25, 1
      %p74 = por %p72, %p73
      %p76 = scmp.ne.s32.totalorder %s59, %s75
      %p77 = scmp.eq.s32.totalorder %s25, 0
      %p78 = por %p76, %p77
      %s79 = ssub.s32 %s19, %s26
      %p80 = scmp.eq.s32.totalorder %s79, 0
      %s82 = sadd.s32 %s81, 1
      %s83 = scalar_select %p80, %s81, %s82
      %p86 = pneg %p80
      %p87 = scmp.eq.s32.totalorder %s19, 1
      %p88 = por %p86, %p87
      %p89 = scmp.ne.s32.totalorder %s81, %s84
      %p90 = scmp.eq.s32.totalorder %s19, 0
      %p91 = por %p89, %p90
      %p92 = scmp.ne.s32.totalorder %s81, %s84
      %p93 = scmp.eq.s32.totalorder %s24, 1
      %p94 = por %p92, %p93
      %p95 = scmp.ne.s32.totalorder %s84, %s85
      %p96 = scmp.eq.s32.totalorder %s24, 0
      %p97 = por %p95, %p96
      %p98 = scmp.ne.s32.totalorder %s84, %s85
      %p99 = scmp.eq.s32.totalorder %s25, 1
      %p100 = por %p98, %p99
      %p102 = scmp.ne.s32.totalorder %s85, %s101
      %p103 = scmp.eq.s32.totalorder %s25, 0
      %p104 = por %p102, %p103
      %s106 = sadd.s32 %s105, 1
      %p109 = scmp.eq.s32.totalorder %s19, 1
      %p110 = scmp.ne.s32.totalorder %s105, %s107
      %p111 = scmp.eq.s32.totalorder %s19, 0
      %p112 = por %p110, %p111
      %p113 = scmp.ne.s32.totalorder %s105, %s107
      %p114 = scmp.eq.s32.totalorder %s24, 1
      %p115 = por %p113, %p114
      %p116 = scmp.ne.s32.totalorder %s107, %s108
      %p117 = scmp.eq.s32.totalorder %s24, 0
      %p118 = por %p116, %p117
      %p119 = scmp.ne.s32.totalorder %s107, %s108
      %p120 = scmp.eq.s32.totalorder %s25, 1
      %p121 = por %p119, %p120
      %p123 = scmp.ne.s32.totalorder %s108, %s122
      %p124 = scmp.eq.s32.totalorder %s25, 0
      %p125 = por %p123, %p124
      %s127 = sadd.s32 %s126, 1
      %p130 = scmp.eq.s32.totalorder %s19, 1
      %p131 = scmp.ne.s32.totalorder %s126, %s128
      %p132 = scmp.eq.s32.totalorder %s19, 0
      %p133 = por %p131, %p132
      %p134 = scmp.ne.s32.totalorder %s126, %s128
      %p135 = scmp.eq.s32.totalorder %s24, 1
      %p136 = por %p134, %p135
      %p137 = scmp.ne.s32.totalorder %s128, %s129
      %p138 = scmp.eq.s32.totalorder %s24, 0
      %p139 = por %p137, %p138
      %p140 = scmp.ne.s32.totalorder %s128, %s129
      %p141 = scmp.eq.s32.totalorder %s25, 1
      %p142 = por %p140, %p141
      %p144 = scmp.ne.s32.totalorder %s129, %s143
      %p145 = scmp.eq.s32.totalorder %s25, 0
      %p146 = por %p144, %p145
      %s147 = ssub.s32 %s19, %s26
      %p148 = scmp.eq.s32.totalorder %s147, 0
      %s150 = sadd.s32 %s149, 1
      %s151 = scalar_select %p148, %s149, %s150
      %p154 = pneg %p148
      %p155 = scmp.eq.s32.totalorder %s19, 1
      %p156 = por %p154, %p155
      %p157 = scmp.ne.s32.totalorder %s149, %s152
      %p158 = scmp.eq.s32.totalorder %s19, 0
      %p159 = por %p157, %p158
      %p160 = scmp.ne.s32.totalorder %s149, %s152
      %p161 = scmp.eq.s32.totalorder %s24, 1
      %p162 = por %p160, %p161
      %p163 = scmp.ne.s32.totalorder %s152, %s153
      %p164 = scmp.eq.s32.totalorder %s24, 0
      %p165 = por %p163, %p164
      %p166 = scmp.ne.s32.totalorder %s152, %s153
      %p167 = scmp.eq.s32.totalorder %s25, 1
      %p168 = por %p166, %p167
      %p170 = scmp.ne.s32.totalorder %s153, %s169
      %p171 = scmp.eq.s32.totalorder %s25, 0
      %p172 = por %p170, %p171
      %s173 = ssub.s32 %s19, %s26
      %p174 = scmp.eq.s32.totalorder %s173, 0
      %s176 = sadd.s32 %s175, 1
      %s177 = scalar_select %p174, %s175, %s176
      %p180 = pneg %p174
      %p181 = scmp.eq.s32.totalorder %s19, 1
      %p182 = por %p180, %p181
      %p183 = scmp.ne.s32.totalorder %s175, %s178
      %p184 = scmp.eq.s32.totalorder %s19, 0
      %p185 = por %p183, %p184
      %p186 = scmp.ne.s32.totalorder %s175, %s178
      %p187 = scmp.eq.s32.totalorder %s24, 1
      %p188 = por %p186, %p187
      %p189 = scmp.ne.s32.totalorder %s178, %s179
      %p190 = scmp.eq.s32.totalorder %s24, 0
      %p191 = por %p189, %p190
      %p192 = scmp.ne.s32.totalorder %s178, %s179
      %p193 = scmp.eq.s32.totalorder %s25, 1
      %p194 = por %p192, %p193
      %p196 = scmp.ne.s32.totalorder %s179, %s195
      %p197 = scmp.eq.s32.totalorder %s25, 0
      %p198 = por %p196, %p197
      %p199 = scmp.le.s32.totalorder 1, %s19
      %p200 = scmp.lt.s32.totalorder %s19, 3
      %p201 = pnand %p199, %p200
      %p202 = pneg %p201
      // Predicated region
      $region9: #{tpu_custom_call.1} parent=5 // pred_check
        _
      $region10: #{tpu_custom_call.1} parent=5 // pred_check_branch
        %204 = sbr.rel (%p201) target = $region12
      $region11: #{tpu_custom_call.1} parent=5 // pred_region
        %s205 = ssub.s32 %s19, 1
        // Predicated region
        $region13: #{tpu_custom_call.1} parent=11 // pred_check
          %p206 = pneg %p118
        $region14: #{tpu_custom_call.1} parent=11 // pred_check_branch
          %208 = sbr.rel (%p206) target = $region16
        $region15: #{tpu_custom_call.1} parent=11 // pred_region
          _
        $region16: #{tpu_custom_call.1} parent=11 // pred_fallthru
          _
        // Predicated region
        $region17: #{tpu_custom_call.1} parent=11 // pred_check
          %p209 = pneg %p139
        $region18: #{tpu_custom_call.1} parent=11 // pred_check_branch
          %211 = sbr.rel (%p209) target = $region20
        $region19: #{tpu_custom_call.1} parent=11 // pred_region
          _
        $region20: #{tpu_custom_call.1} parent=11 // pred_fallthru
          _
      $region12: #{tpu_custom_call.1} parent=5 // pred_fallthru
        _
      %p212 = scmp.lt.s32.totalorder %s19, 2
      // Predicated region
      $region21: #{tpu_custom_call.1} parent=5 // pred_check
        %p213 = pneg %p212
      $region22: #{tpu_custom_call.1} parent=5 // pred_check_branch
        %215 = sbr.rel (%p213) target = $region24
      $region23: #{tpu_custom_call.1} parent=5 // pred_region
        // Predicated region
        $region25: #{tpu_custom_call.1} parent=23 // pred_check
          %p216 = pneg %p39
        $region26: #{tpu_custom_call.1} parent=23 // pred_check_branch
          %218 = sbr.rel (%p216) target = $region28
        $region27: #{tpu_custom_call.1} parent=23 // pred_region
          %p219 = scmp.lt.s32.totalorder %s19, 1
          %s220 = scalar_select %p219, %s19, 1
          %s221 = smul.addr %s220, 4
          %s222 = scalar_lea.vmem %s0, %s221
        $region28: #{tpu_custom_call.1} parent=23 // pred_fallthru
          _
        // Predicated region
        $region29: #{tpu_custom_call.1} parent=23 // pred_check
          %p223 = pneg %p65
        $region30: #{tpu_custom_call.1} parent=23 // pred_check_branch
          %225 = sbr.rel (%p223) target = $region32
        $region31: #{tpu_custom_call.1} parent=23 // pred_region
          %p226 = scmp.lt.s32.totalorder %s19, 1
          %s227 = scalar_select %p226, %s19, 1
          %s228 = scalar_lea.vmem %s1, %s227
        $region32: #{tpu_custom_call.1} parent=23 // pred_fallthru
          _
        // Predicated region
        $region33: #{tpu_custom_call.1} parent=23 // pred_check
          %p229 = pneg %p91
        $region34: #{tpu_custom_call.1} parent=23 // pred_check_branch
          %231 = sbr.rel (%p229) target = $region36
        $region35: #{tpu_custom_call.1} parent=23 // pred_region
          %p232 = scmp.lt.s32.totalorder %s19, 1
          %s233 = scalar_select %p232, %s19, 1
          %s234 = smul.addr %s233, 8
          %s235 = scalar_lea.vmem %s2, %s234
        $region36: #{tpu_custom_call.1} parent=23 // pred_fallthru
          _
      $region24: #{tpu_custom_call.1} parent=5 // pred_fallthru
        _
      %p236 = scmp.le.s32.totalorder 1, %s19
      %p237 = scmp.lt.s32.totalorder %s19, 3
      %p238 = pnand %p236, %p237
      %p239 = pneg %p238
      // Predicated region
      $region37: #{tpu_custom_call.1} parent=5 // pred_check
        _
      $region38: #{tpu_custom_call.1} parent=5 // pred_check_branch
        %241 = sbr.rel (%p238) target = $region40
      $region39: #{tpu_custom_call.1} parent=5 // pred_region
        %s242 = ssub.s32 %s19, 1
        %p243 = scmp.lt.s32.totalorder %s24, 1
        %s244 = scalar_select %p243, %s24, 1
        %s245 = smul.addr %s244, 4
        %s246 = scalar_lea.vmem %s0, %s245
        %p247 = pneg %p45
        %p248 = pneg %p42
        %p249 = scmp.lt.s32.totalorder %s24, 1
        %s250 = scalar_select %p249, %s24, 1
        %s251 = scalar_lea.vmem %s1, %s250
        %p252 = pneg %p71
        %p253 = pneg %p68
        %p254 = scmp.lt.s32.totalorder %s24, 1
        %s255 = scalar_select %p254, %s24, 1
        %s256 = smul.addr %s255, 8
        %s257 = scalar_lea.vmem %s2, %s256
        %p258 = pneg %p97
        %p259 = pneg %p94
        %p260 = pneg %p118
        %p261 = pneg %p115
        %p262 = pneg %p139
        %p263 = pneg %p136
        %p264 = pneg %p165
        %p265 = pneg %p162
        %s266 = sand.u32 %s152, 1
        %s267 = scalar_lea.sflag [#allocation3], %s266
        %s268 = sand.u32 %s152, 1
        %s269 = scalar_lea.vmem [#allocation2], %s268
        %p270 = pneg %p191
        %p271 = pneg %p188
        %s272 = sand.u32 %s178, 1
        %s273 = scalar_lea.sflag [#allocation5], %s272
        %s274 = sand.u32 %s178, 1
        %s275 = scalar_lea.vmem [#allocation4], %s274
        %p276 = scmp.lt.s32.totalorder %s24, 1
        %s277 = scalar_select %p276, %s24, 1
        %s278 = smul.addr %s277, 4
        %s279 = scalar_lea.vmem %s0, %s278
        %p280 = scmp.lt.s32.totalorder %s24, 1
        %s281 = scalar_select %p280, %s24, 1
        %s282 = scalar_lea.vmem %s1, %s281
        %p283 = scmp.lt.s32.totalorder %s24, 1
        %s284 = scalar_select %p283, %s24, 1
        %s285 = smul.addr %s284, 8
        %s286 = scalar_lea.vmem %s2, %s285
        %v288 = vld [vmem:[%s279] sm:$0xf]
        %v289 = vld [vmem:[%s3] sm:$0xf]
        %v290 = vld [vmem:[%s3 + $0x4] sm:$0xf]
        %v293 = vunpack.c.l.b16 %v289
        %v294 = vunpack.c.l.b16 %v290
        %v295 = vpack.c.b16 %v294, %v293
        %vm297 = vcmask 130048
        %v299 = vsel %vm297, %v288, 0
        %301 = vmatprep.subr.bf16.mxu0 0
        %302 = vmatpush1.bf16.msra.mxu0 %v295
        %303 = vmatprep.subr.bf16.mxu0 0
        %304 = vmatpush1.bf16.msra.mxu0 0
        %305 = vmatprep.subr.bf16.mxu0 0
        %306 = vmatpush1.bf16.msra.mxu0 0
        %307 = vmatprep.subr.bf16.mxu0 0
        %308 = vmatpush1.bf16.msra.mxu0 0
        %309 = vmatprep.subr.bf16.mxu0 0
        %310 = vmatpush1.bf16.msra.mxu0 0
        %311 = vmatprep.subr.bf16.mxu0 0
        %312 = vmatpush1.bf16.msra.mxu0 0
        %313 = vmatprep.subr.bf16.mxu0 0
        %314 = vmatpush1.bf16.msra.mxu0 0
        %315 = vmatprep.subr.bf16.mxu0 0
        %316 = vmatpush1.bf16.msra.mxu0 0
        %317 = vmatprep.subr.bf16.mxu0 0
        %318 = vmatpush1.bf16.msra.mxu0 0
        %319 = vmatprep.subr.bf16.mxu0 0
        %320 = vmatpush1.bf16.msra.mxu0 0
        %321 = vmatprep.subr.bf16.mxu0 0
        %322 = vmatpush1.bf16.msra.mxu0 0
        %323 = vmatprep.subr.bf16.mxu0 0
        %324 = vmatpush1.bf16.msra.mxu0 0
        %325 = vmatprep.subr.bf16.mxu0 0
        %326 = vmatpush1.bf16.msra.mxu0 0
        %327 = vmatprep.subr.bf16.mxu0 0
        %328 = vmatpush1.bf16.msra.mxu0 0
        %329 = vmatprep.subr.bf16.mxu0 0
        %330 = vmatpush1.bf16.msra.mxu0 0
        %331 = vmatprep.subr.bf16.mxu0 0
        %332 = vmatpush1.bf16.msra.mxu0 0
        %333 = vmatprep.mubr.bf16.mxu0 0
        %334 = vmatmul.mubr.bf16.gmra.mrb[0].mxu0 %v299
        %v335 = vpop.f32.mrb[0].mxu0
        %v336 = vadd.f32 0.0, %v335
        %v337 = vpop.f32.mrb[0].mxu0
        %v338 = vpop.f32.mrb[0].mxu0
        %v339 = vpop.f32.mrb[0].mxu0
        %340 = vdwg.mxu0
        %v341 = vld [vmem:[%s282] sm:$0x1]
        %v343 = vlaneseq
        %v344 = vshrl.u32 %v343, 7
        %v345 = vsub.s32 0, %v344
        %v346 = vrot.slane %v341, %v345
        %v348 = vadd.f32 %v336, %v346
        %v349 = vtanh.pop %v348
        %v350 = vld [vmem:[%s4] sm:$0x1]
        %v352 = vlaneseq
        %v353 = vshrl.u32 %v352, 7
        %v354 = vsub.s32 0, %v353
        %v355 = vrot.slane %v350, %v354
        %v357 = vmul.f32 %v349, %v355
        %v358 = vsel %vm297, %v357, 0.0
        %359 = vadd.xlane.f32.xlu0 %v358
        %v360 = vpop.xlane.xlu0 %359
        %v361 = vld [vmem:[%s286] sm:$0xff]
        %v362 = vadd.f32 %v360, %v361
        %vm363 = vcmask 7168
        %v364 = vsel %vm363, %v362, -inf
        %v365 = vrot.slane %v364, 4
        %v366 = vmax.f32 %v364, %v365
        %v367 = vrot.slane %v366, 2
        %v368 = vmax.f32 %v366, %v367
        %v369 = vrot.slane %v368, 1
        %v370 = vmax.f32 %v368, %v369
        %v371 = vlaneseq
        %v372 = vshrl.u32 %v371, 7
        %vm373 = vcmp.ge.f32.partialorder %v362, %v370
        %v374 = vsel %vm373, %v372, 8
        %v375 = vsel %vm363, %v374, 2147483647
        %v376 = vrot.slane %v375, 4
        %vm377 = vcmp.lt.s32.totalorder %v375, %v376
        %v378 = vsel %vm377, %v375, %v376
        %v379 = vrot.slane %v378, 2
        %vm380 = vcmp.lt.s32.totalorder %v378, %v379
        %v381 = vsel %vm380, %v378, %v379
        %v382 = vrot.slane %v381, 1
        %vm383 = vcmp.lt.s32.totalorder %v381, %v382
        %v384 = vsel %vm383, %v381, %v382
        %v385 = vlaneseq
        %v386 = vand.u32 %v385, 127
        %387 = vset.pattern.permute.xlu0 0
        %388 = vperm.xlu0 %387, %v384
        %v389 = vpop.permute.xlu0 %388
        %vm390 = vcmp.eq.s32.totalorder %v386, %v389
        %v391 = vsel %vm390, 1, 0
        %v392 = vcvt.s32.f32 %v391
        %vm393 = vcmask 57344
        %394 = vst.msk [vmem:[%s275] sm:$0x1] %vm393, %v392
        %vm395 = vcmp.eq.s32.totalorder %v372, %v384
        %v396 = vunpack.c.l.bf16 %v288
        %v397 = vsel %vm395, 1, 0
        %398 = vset.pattern.permute.xlu0 0
        %399 = vperm.xlu0 %398, %v397
        %v400 = vpop.permute.xlu0 %399
        %vm401 = vcmp.eq.s32.totalorder %v400, 1
        %v402 = vsel %vm401, %v396, 0.0
        %v403 = vsel %vm297, %v402, 0.0
        %v404 = vrot.slane %v403, 4
        %v405 = vadd.f32 %v403, %v404
        %v406 = vrot.slane %v405, 2
        %v407 = vadd.f32 %v405, %v406
        %v408 = vrot.slane %v407, 1
        %v409 = vadd.f32 %v407, %v408
        %vm410 = vcmask 122880
        %411 = vst.msk [vmem:[%s269] sm:$0x1] %vm410, %v409
        %s412 = sand.u32 %s152, 1
        %s413 = scalar_lea.sflag [#allocation3], %s412
        %s414 = sand.u32 %s152, 1
        %s415 = scalar_lea.vmem [#allocation2], %s414
        %s416 = sand.u32 %s178, 1
        %s417 = scalar_lea.sflag [#allocation5], %s416
        %s418 = sand.u32 %s178, 1
        %s419 = scalar_lea.vmem [#allocation4], %s418
        // Predicated region
        $region41: #{tpu_custom_call.1} parent=39 // pred_check
          %p420 = pneg %p162
        $region42: #{tpu_custom_call.1} parent=39 // pred_check_branch
          %422 = sbr.rel (%p420) target = $region44
        $region43: #{tpu_custom_call.1} parent=39 // pred_region
          %s424 = ssub.s32 16, 16
          %425 = vsyncadd %s413, %s424
          %s426 = smul.addr %s24, 16
          %s427 = scalar_lea.hbm %s5, %s426
          %s429 = sshll.u32 %s415, 4
          %s430 = int_to_ptr.vmem [resolvable:$true] %s429
          %432 = dma.vmem_to_hbm [thread:$0]  %s430, 16, %s427, %s413
        $region44: #{tpu_custom_call.1} parent=39 // pred_fallthru
          _
        // Predicated region
        $region45: #{tpu_custom_call.1} parent=39 // pred_check
          %p433 = pneg %p188
        $region46: #{tpu_custom_call.1} parent=39 // pred_check_branch
          %435 = sbr.rel (%p433) target = $region48
        $region47: #{tpu_custom_call.1} parent=39 // pred_region
          %s437 = ssub.s32 16, 16
          %438 = vsyncadd %s417, %s437
          %s439 = smul.addr %s24, 16
          %s440 = scalar_lea.hbm %s6, %s439
          %s442 = sshll.u32 %s419, 4
          %s443 = int_to_ptr.vmem [resolvable:$true] %s442
          %445 = dma.vmem_to_hbm [thread:$0]  %s443, 16, %s440, %s417
        $region48: #{tpu_custom_call.1} parent=39 // pred_fallthru
          _
      $region40: #{tpu_custom_call.1} parent=5 // pred_fallthru
        _
      %p446 = scmp.le.s32.totalorder 2, %s19
      // Predicated region
      $region49: #{tpu_custom_call.1} parent=5 // pred_check
        %p447 = pneg %p446
      $region50: #{tpu_custom_call.1} parent=5 // pred_check_branch
        %449 = sbr.rel (%p447) target = $region52
      $region51: #{tpu_custom_call.1} parent=5 // pred_region
        %s450 = ssub.s32 %s19, 2
        // Predicated region
        $region53: #{tpu_custom_call.1} parent=51 // pred_check
          %p451 = pneg %p168
        $region54: #{tpu_custom_call.1} parent=51 // pred_check_branch
          %453 = sbr.rel (%p451) target = $region56
        $region55: #{tpu_custom_call.1} parent=51 // pred_region
          %s454 = sand.u32 %s153, 1
          %s455 = scalar_lea.sflag [#allocation3], %s454
          %s456 = sand.u32 %s153, 1
          %s457 = scalar_lea.vmem [#allocation2], %s456
          %458 = dma.done %s455, 16
        $region56: #{tpu_custom_call.1} parent=51 // pred_fallthru
          _
        // Predicated region
        $region57: #{tpu_custom_call.1} parent=51 // pred_check
          %p459 = pneg %p194
        $region58: #{tpu_custom_call.1} parent=51 // pred_check_branch
          %461 = sbr.rel (%p459) target = $region60
        $region59: #{tpu_custom_call.1} parent=51 // pred_region
          %s462 = sand.u32 %s179, 1
          %s463 = scalar_lea.sflag [#allocation5], %s462
          %s464 = sand.u32 %s179, 1
          %s465 = scalar_lea.vmem [#allocation4], %s464
          %466 = dma.done %s463, 16
        $region60: #{tpu_custom_call.1} parent=51 // pred_fallthru
          _
      $region52: #{tpu_custom_call.1} parent=5 // pred_fallthru
        _
    $region6: #{tpu_custom_call.1} parent=1 // loop_footer
      %s23 = sadd.s32 1, %s19
    $region7: #{tpu_custom_call.1} parent=1 // loop_footer_branch
      %18 = sbr.rel target = $region3
    $region8: #{tpu_custom_call.1} parent=1 // loop_exit
      _
    %467 = vsyncpa [#allocation3], 1
    %s468 = scalar_lea.sflag [#allocation3], 1
    %469 = vsyncpa %s468, 1
    %470 = vsyncpa [#allocation5], 1
    %s471 = scalar_lea.sflag [#allocation5], 1
    %472 = vsyncpa %s471, 1

</llo_original>
